<compile_context>
chip_gen: v6e
topology: v6e:2x2x1
jax: 0.10.0
libtpu: 0.0.40
codegen_flags: <defaults>
</compile_context>

<pallas_src>
import functools
import math

import jax
import jax.numpy as jnp
from jax.experimental import pallas as pl
from jax.experimental.pallas import tpu as pltpu


def _embed_fc_kernel(x_ref, w1_ref, b1_ref, w2_ref, b2_ref, o_ref, *,
                     approximate):
    # Fused one-layer MLP on a (tm, input_dim) batch tile, all in VMEM.
    x = x_ref[...]

    # First linear (MXU, f32 accumulate) + bias.
    h = jnp.dot(x, w1_ref[...], preferred_element_type=jnp.float32)
    h = h + b1_ref[...]

    if approximate:
        # tanh-approx GELU -> EUP slot (separate VLIW slot, ~free).
        c = jnp.float32(math.sqrt(2.0 / math.pi))
        g = 0.5 * h * (1.0 + jnp.tanh(c * (h + 0.044715 * (h * h * h))))
    else:
        # Exact GELU (matches torch.nn.GELU(approximate='none')).
        inv_sqrt2 = jnp.float32(1.0 / math.sqrt(2.0))
        g = 0.5 * h * (1.0 + jax.lax.erf(h * inv_sqrt2))

    # Second linear (MXU, f32 accumulate) + bias.
    out = jnp.dot(g.astype(w2_ref.dtype), w2_ref[...],
                  preferred_element_type=jnp.float32)
    out = out + b2_ref[...]

    o_ref[...] = out.astype(o_ref.dtype)


def _round_up(v, m):
    return (v + m - 1) // m * m


def embed_fc(x, w1, b1, w2, b2, *, block_m=2048, approximate_gelu=False):
    """EmbedFC.forward: x.view(-1, input_dim) @ W1 + b1 -> GELU -> @ W2 + b2."""
    input_dim, hidden = w1.shape
    emb_dim = w2.shape[1]

    x2d = x.reshape(-1, input_dim)          # glue: x.view(-1, input_dim)
    n = x2d.shape[0]
    dtype = x2d.dtype
    itemsize = jnp.dtype(dtype).itemsize

    # Dtype-aware sublane granularity for the batch tile (f32:8, bf16:16, 8b:32).
    sublane = {4: 8, 2: 16, 1: 32}.get(itemsize, 8)

    # VMEM budget: double-buffered x/out tiles + (conservatively double-
    # buffered) resident weights must fit v5e's 16 MiB scoped default and
    # leave headroom on v7x's smaller VMEM.
    weight_bytes = 2 * sum(int(a.size) * jnp.dtype(a.dtype).itemsize
                           for a in (w1, b1, w2, b2))
    row_bytes = 2 * (input_dim + emb_dim) * itemsize   # double-buffered in+out
    budget = 12 * 1024 * 1024
    tm_cap = max(sublane, (budget - weight_bytes) // max(row_bytes, 1))

    tm = min(int(block_m), int(tm_cap), _round_up(n, sublane))
    tm = max(sublane, (tm // sublane) * sublane)

    grid = (pl.cdiv(n, tm),)   # ragged last block: clipped reads, masked writes

    b1_2d = b1.reshape(1, hidden)
    b2_2d = b2.reshape(1, emb_dim)

    flops = 2 * n * (input_dim * hidden + hidden * emb_dim)
    bytes_accessed = (
        n * input_dim * itemsize
        + weight_bytes // 2
        + n * emb_dim * itemsize
    )
    transcendentals = n * hidden if approximate_gelu else 0

    kernel = functools.partial(_embed_fc_kernel, approximate=approximate_gelu)

    out = pl.pallas_call(
        kernel,
        out_shape=jax.ShapeDtypeStruct((n, emb_dim), dtype),
        grid=grid,
        in_specs=[
            # x: tiled over batch; feature dim is the full extent.
            pl.BlockSpec((tm, input_dim), lambda i: (i, 0)),
            # Weights/biases: constant full-extent blocks, resident in VMEM.
            pl.BlockSpec((input_dim, hidden), lambda i: (0, 0)),
            pl.BlockSpec((1, hidden), lambda i: (0, 0)),
            pl.BlockSpec((hidden, emb_dim), lambda i: (0, 0)),
            pl.BlockSpec((1, emb_dim), lambda i: (0, 0)),
        ],
        # Last dim == full array dim, so this satisfies the (8,128) rule even
        # when emb_dim < 128; no padded output slab, no post-kernel slice.
        out_specs=pl.BlockSpec((tm, emb_dim), lambda i: (i, 0)),
        compiler_params=pltpu.CompilerParams(
            dimension_semantics=("parallel",)),
        cost_estimate=pl.CostEstimate(
            flops=flops,
            transcendentals=transcendentals,
            bytes_accessed=bytes_accessed),
    )(x2d, w1, b1_2d, w2, b2_2d)

    return out


def _init_params(key, input_dim, emb_dim, dtype=jnp.float32):
    """Deterministic PyTorch-style (uniform +-1/sqrt(fan_in)) init."""
    k1, k2, k3, k4 = jax.random.split(key, 4)
    bound1 = 1.0 / math.sqrt(input_dim)
    bound2 = 1.0 / math.sqrt(emb_dim)
    # Stored as (in, out) so the kernel computes x @ W.
    w1 = jax.random.uniform(k1, (input_dim, emb_dim), dtype, -bound1, bound1)
    b1 = jax.random.uniform(k2, (emb_dim,), dtype, -bound1, bound1)
    w2 = jax.random.uniform(k3, (emb_dim, emb_dim), dtype, -bound2, bound2)
    b2 = jax.random.uniform(k4, (emb_dim,), dtype, -bound2, bound2)
    return w1, b1, w2, b2


def _reference(x, w1, b1, w2, b2):
    x2d = x.reshape(-1, w1.shape[0])
    h = x2d @ w1 + b1
    g = 0.5 * h * (1.0 + jax.lax.erf(h / jnp.sqrt(2.0)))
    return g @ w2 + b2


if __name__ == "__main__":
    input_dim = 32
    emb_dim = 64

    key = jax.random.PRNGKey(0)
    kx, kp, kx2 = jax.random.split(key, 3)
    w1, b1, w2, b2 = _init_params(kp, input_dim, emb_dim)

    # Case 1: tiny batch (module spec shape (n, input_dim)).
    n = 8
    x = jax.random.normal(kx, (n, input_dim), jnp.float32)
    out = jax.block_until_ready(embed_fc(x, w1, b1, w2, b2))
    ref = _reference(x, w1, b1, w2, b2)
    assert out.shape == (n, emb_dim)
    assert jnp.allclose(out, ref, atol=1e-5, rtol=1e-5)

    # Case 2: batch not a multiple of 8 (exercises the ragged last block).
    n2 = 20
    x2 = jax.random.normal(kx2, (n2, input_dim), jnp.float32)
    out2 = jax.block_until_ready(embed_fc(x2, w1, b1, w2, b2))
    ref2 = _reference(x2, w1, b1, w2, b2)
    assert out2.shape == (n2, emb_dim)
    assert jnp.allclose(out2, ref2, atol=1e-5, rtol=1e-5)

    # Case 3: higher-rank input exercising the x.view(-1, input_dim) glue.
    x3 = jax.random.normal(kx2, (2, 4, input_dim), jnp.float32)
    out3 = jax.block_until_ready(embed_fc(x3, w1, b1, w2, b2))
    ref3 = _reference(x3, w1, b1, w2, b2)
    assert out3.shape == (8, emb_dim)
    assert jnp.allclose(out3, ref3, atol=1e-5, rtol=1e-5)

    print("KERNEL_OK")
</pallas_src>

<mosaic_0001>
module attributes {stable_mosaic.version = 11 : i64} {
  func.func @_embed_fc_kernel(%arg0: i32, %arg1: memref<8x32xf32, #tpu.memory_space<vmem>>, %arg2: memref<32x64xf32, #tpu.memory_space<vmem>>, %arg3: memref<1x64xf32, #tpu.memory_space<vmem>>, %arg4: memref<64x64xf32, #tpu.memory_space<vmem>>, %arg5: memref<1x64xf32, #tpu.memory_space<vmem>>, %arg6: memref<8x64xf32, #tpu.memory_space<vmem>>) attributes {dimension_semantics = [#tpu.dimension_semantics<parallel>], iteration_bounds = array<i64: 1>, scalar_prefetch = 0 : i64, scratch_operands = 0 : i64, tpu.core_type = #tpu.core_type<tc>, window_params = [{transform_indices = @transform_0, window_bounds = array<i64: 8, 32>}, {pipeline_mode = #tpu.pipeline_mode<synchronous>, transform_indices = @transform_1, window_bounds = array<i64: 32, 64>}, {pipeline_mode = #tpu.pipeline_mode<synchronous>, transform_indices = @transform_2, window_bounds = array<i64: 1, 64>}, {pipeline_mode = #tpu.pipeline_mode<synchronous>, transform_indices = @transform_3, window_bounds = array<i64: 64, 64>}, {pipeline_mode = #tpu.pipeline_mode<synchronous>, transform_indices = @transform_4, window_bounds = array<i64: 1, 64>}, {transform_indices = @transform_5, window_bounds = array<i64: 8, 64>}]} {
    %c0 = arith.constant 0 : index
    %c0_0 = arith.constant 0 : index
    %0 = vector.load %arg1[%c0, %c0_0] : memref<8x32xf32, #tpu.memory_space<vmem>>, vector<8x32xf32>
    %c0_1 = arith.constant 0 : index
    %c0_2 = arith.constant 0 : index
    %1 = vector.load %arg2[%c0_1, %c0_2] : memref<32x64xf32, #tpu.memory_space<vmem>>, vector<32x64xf32>
    %cst = arith.constant dense<0.000000e+00> : vector<8x64xf32>
    %2 = tpu.matmul %0, %1, %cst {dimension_numbers = #tpu.dot_dimension_numbers<[1], [0], [0], [1], [0, 0, 1, 1], [], []>} : vector<8x32xf32>, vector<32x64xf32>, vector<8x64xf32> -> vector<8x64xf32>
    %c0_3 = arith.constant 0 : index
    %c0_4 = arith.constant 0 : index
    %3 = vector.load %arg3[%c0_3, %c0_4] : memref<1x64xf32, #tpu.memory_space<vmem>>, vector<1x64xf32>
    %4 = vector.broadcast %3 : vector<1x64xf32> to vector<8x64xf32>
    %5 = arith.addf %2, %4 : vector<8x64xf32>
    %cst_5 = arith.constant 5.000000e-01 : f32
    %6 = vector.broadcast %cst_5 : f32 to vector<8x64xf32>
    %7 = arith.mulf %6, %5 : vector<8x64xf32>
    %cst_6 = arith.constant 0.707106769 : f32
    %8 = vector.broadcast %cst_6 : f32 to vector<8x64xf32>
    %9 = arith.mulf %5, %8 : vector<8x64xf32>
    %10 = math.erf %9 : vector<8x64xf32>
    %cst_7 = arith.constant 1.000000e+00 : f32
    %11 = vector.broadcast %cst_7 : f32 to vector<8x64xf32>
    %12 = arith.addf %11, %10 : vector<8x64xf32>
    %13 = arith.mulf %7, %12 : vector<8x64xf32>
    %c0_8 = arith.constant 0 : index
    %c0_9 = arith.constant 0 : index
    %14 = vector.load %arg4[%c0_8, %c0_9] : memref<64x64xf32, #tpu.memory_space<vmem>>, vector<64x64xf32>
    %cst_10 = arith.constant dense<0.000000e+00> : vector<8x64xf32>
    %15 = tpu.matmul %13, %14, %cst_10 {dimension_numbers = #tpu.dot_dimension_numbers<[1], [0], [0], [1], [0, 0, 1, 1], [], []>} : vector<8x64xf32>, vector<64x64xf32>, vector<8x64xf32> -> vector<8x64xf32>
    %c0_11 = arith.constant 0 : index
    %c0_12 = arith.constant 0 : index
    %16 = vector.load %arg5[%c0_11, %c0_12] : memref<1x64xf32, #tpu.memory_space<vmem>>, vector<1x64xf32>
    %17 = vector.broadcast %16 : vector<1x64xf32> to vector<8x64xf32>
    %18 = arith.addf %15, %17 : vector<8x64xf32>
    %c0_13 = arith.constant 0 : index
    %c0_14 = arith.constant 0 : index
    %19 = vector.load %arg6[%c0_13, %c0_14] : memref<8x64xf32, #tpu.memory_space<vmem>>, vector<8x64xf32>
    tpu.vector_store %arg6[%c0_13, %c0_14], %18 {strides = array<i32>} : memref<8x64xf32, #tpu.memory_space<vmem>>, vector<8x64xf32>,
    return
  }
  func.func @transform_0(%arg0: i32) -> (i32, i32) {
    %c0_i32 = arith.constant 0 : i32
    %c0_i32_0 = arith.constant 0 : i32
    return %arg0, %c0_i32 : i32, i32
  }
  func.func @transform_1(%arg0: i32) -> (i32, i32) {
    %c0_i32 = arith.constant 0 : i32
    %c0_i32_0 = arith.constant 0 : i32
    %c0_i32_1 = arith.constant 0 : i32
    return %c0_i32, %c0_i32_0 : i32, i32
  }
  func.func @transform_2(%arg0: i32) -> (i32, i32) {
    %c0_i32 = arith.constant 0 : i32
    %c0_i32_0 = arith.constant 0 : i32
    %c0_i32_1 = arith.constant 0 : i32
    return %c0_i32, %c0_i32_0 : i32, i32
  }
  func.func @transform_3(%arg0: i32) -> (i32, i32) {
    %c0_i32 = arith.constant 0 : i32
    %c0_i32_0 = arith.constant 0 : i32
    %c0_i32_1 = arith.constant 0 : i32
    return %c0_i32, %c0_i32_0 : i32, i32
  }
  func.func @transform_4(%arg0: i32) -> (i32, i32) {
    %c0_i32 = arith.constant 0 : i32
    %c0_i32_0 = arith.constant 0 : i32
    %c0_i32_1 = arith.constant 0 : i32
    return %c0_i32, %c0_i32_0 : i32, i32
  }
  func.func @transform_5(%arg0: i32) -> (i32, i32) {
    %c0_i32 = arith.constant 0 : i32
    %c0_i32_0 = arith.constant 0 : i32
    return %arg0, %c0_i32 : i32, i32
  }
}

</mosaic_0001>

<llo_original>
// kernel: tpu_custom_call.1
$region0: #{tpu_custom_call.1}
  #allocation0 [shape = 'u32[]', space=smem, size = 0x4, offset = 0x4, fixed_abs, tag = 'smem constant byte address 0x4 - core index']
  #allocation1 [shape = 'u32[144,128]{1,0:T(1,128)}', space=vmem, size = 0x12000, scoped, tag = 'internal scratch']
  %s0 = inlined_call_operand.hbm [shape: f32[8,32], index: 0, kind: input, shape index: {}]
  %s1 = inlined_call_operand.hbm [shape: f32[32,64], index: 1, kind: input, shape index: {}]
  %s2 = inlined_call_operand.vmem [shape: f32[1,64], index: 2, kind: input, shape index: {}]
  %s3 = inlined_call_operand.hbm [shape: f32[64,64], index: 3, kind: input, shape index: {}]
  %s4 = inlined_call_operand.vmem [shape: f32[1,64], index: 4, kind: input, shape index: {}]
  %s5 = inlined_call_operand.hbm [shape: f32[8,64], index: 5, kind: output, shape index: {}]
  %s6 = sld [smem:[#allocation0]]
  $region42: #{tpu_custom_call.1} parent=0
    _
  %s8 = ssub.s32 1, %s6
  %s9 = scalar_select 0, %s8, %s6
  $region1: #{tpu_custom_call.1} parent=0
    #allocation2 [shape = 'u8[4096]{0}', space=vmem, size = 0x1000, scoped, tag = 'input window, operand 0, single buffered']
    #allocation3 [shape = 's32[1]{0}', space=sflag, size = 0x4, scoped, tag = 'scoped memory for tpu_custom_call.1']
    #allocation4 [shape = 's32[1]{0}', space=sflag, size = 0x4, scoped, tag = 'scoped memory for tpu_custom_call.1']
    #allocation5 [shape = 'u8[16384]{0}', space=vmem, size = 0x4000, scoped, tag = 'input window, operand 1, single buffered']
    #allocation6 [shape = 's32[1]{0}', space=sflag, size = 0x4, scoped, tag = 'scoped memory for tpu_custom_call.1']
    #allocation7 [shape = 'u8[32768]{0}', space=vmem, size = 0x8000, scoped, tag = 'input window, operand 3, single buffered']
    #allocation8 [shape = 'u8[4096]{0}', space=vmem, size = 0x1000, scoped, tag = 'output window, operand 0, single buffered']
    %10 = vsyncpa [#allocation3], 0
    %11 = vsyncpa [#allocation6], 0
    %12 = vsyncpa [#allocation4], 0
    // Predicated region
    $region2: #{tpu_custom_call.1} parent=1 // pred_check
      _
    $region3: #{tpu_custom_call.1} parent=1 // pred_check_branch
      %14 = sbr.rel (0) target = $region5
    $region4: #{tpu_custom_call.1} parent=1 // pred_region
      %s16 = ssub.s32 128, 128
      %17 = vsyncadd [#allocation3], %s16
      %s19 = sshll.u32 [#allocation2], 4
      %s20 = int_to_ptr.vmem [resolvable:$true] %s19
      %22 = dma.hbm_to_vmem [thread:$0]  %s0, 128, %s20, [#allocation3]
    $region5: #{tpu_custom_call.1} parent=1 // pred_fallthru
      _
    // Predicated region
    $region6: #{tpu_custom_call.1} parent=1 // pred_check
      _
    $region7: #{tpu_custom_call.1} parent=1 // pred_check_branch
      %24 = sbr.rel (0) target = $region9
    $region8: #{tpu_custom_call.1} parent=1 // pred_region
      %s26 = ssub.s32 512, 512
      %27 = vsyncadd [#allocation6], %s26
      %s28 = sshll.u32 [#allocation5], 4
      %s29 = int_to_ptr.vmem [resolvable:$true] %s28
      %34 = dma.hbm_to_vmem [thread:$0]  %s1, 512, %s29, [#allocation6], 128, 128, 8
    $region9: #{tpu_custom_call.1} parent=1 // pred_fallthru
      _
    // Predicated region
    $region10: #{tpu_custom_call.1} parent=1 // pred_check
      _
    $region11: #{tpu_custom_call.1} parent=1 // pred_check_branch
      %36 = sbr.rel (0) target = $region13
    $region12: #{tpu_custom_call.1} parent=1 // pred_region
      _
    $region13: #{tpu_custom_call.1} parent=1 // pred_fallthru
      _
    // Predicated region
    $region14: #{tpu_custom_call.1} parent=1 // pred_check
      _
    $region15: #{tpu_custom_call.1} parent=1 // pred_check_branch
      %38 = sbr.rel (0) target = $region17
    $region16: #{tpu_custom_call.1} parent=1 // pred_region
      %s40 = ssub.s32 1024, 1024
      %41 = vsyncadd [#allocation6], %s40
      %s42 = sshll.u32 [#allocation7], 4
      %s43 = int_to_ptr.vmem [resolvable:$true] %s42
      %48 = dma.hbm_to_vmem [thread:$0]  %s3, 1024, %s43, [#allocation6], 128, 128, 8
    $region17: #{tpu_custom_call.1} parent=1 // pred_fallthru
      _
    // Predicated region
    $region18: #{tpu_custom_call.1} parent=1 // pred_check
      _
    $region19: #{tpu_custom_call.1} parent=1 // pred_check_branch
      %50 = sbr.rel (0) target = $region21
    $region20: #{tpu_custom_call.1} parent=1 // pred_region
      _
    $region21: #{tpu_custom_call.1} parent=1 // pred_fallthru
      _
    // Predicated region
    $region22: #{tpu_custom_call.1} parent=1 // pred_check
      _
    $region23: #{tpu_custom_call.1} parent=1 // pred_check_branch
      %52 = sbr.rel (0) target = $region25
    $region24: #{tpu_custom_call.1} parent=1 // pred_region
      %53 = dma.done [#allocation3], 128
    $region25: #{tpu_custom_call.1} parent=1 // pred_fallthru
      _
    // Predicated region
    $region26: #{tpu_custom_call.1} parent=1 // pred_check
      _
    $region27: #{tpu_custom_call.1} parent=1 // pred_check_branch
      %55 = sbr.rel (0) target = $region29
    $region28: #{tpu_custom_call.1} parent=1 // pred_region
      %56 = dma.done [#allocation6], 512
    $region29: #{tpu_custom_call.1} parent=1 // pred_fallthru
      _
    // Predicated region
    $region30: #{tpu_custom_call.1} parent=1 // pred_check
      _
    $region31: #{tpu_custom_call.1} parent=1 // pred_check_branch
      %58 = sbr.rel (0) target = $region33
    $region32: #{tpu_custom_call.1} parent=1 // pred_region
      %59 = dma.done [#allocation6], 1024
    $region33: #{tpu_custom_call.1} parent=1 // pred_fallthru
      _
    %v60 = vld [vmem:[#allocation2] sm:$0xff]
    %v61 = vld [vmem:[#allocation5] sm:$0xff]
    %v62 = vld [vmem:[#allocation5 + $0x8] sm:$0xff]
    %v63 = vld [vmem:[#allocation5 + $0x10] sm:$0xff]
    %v64 = vld [vmem:[#allocation5 + $0x18] sm:$0xff]
    %v65 = vld [vmem:[%s2] sm:$0x1]
    %v67 = vlaneseq
    %v68 = vshrl.u32 %v67, 7
    %v69 = vsub.s32 0, %v68
    %v70 = vrot.slane %v65, %v69
    %vm72 = vcmask 261120
    %v74 = vsel %vm72, %v60, 0
    %76 = vmatprep.subr.mxu0 0.0
    %77 = vmatpush1.msra.mxu0 0.0
    %78 = vmatprep.subr.mxu0 0.0
    %79 = vmatpush1.msra.mxu0 0.0
    %80 = vmatprep.subr.mxu0 0.0
    %81 = vmatpush1.msra.mxu0 0.0
    %82 = vmatprep.subr.mxu0 0.0
    %83 = vmatpush1.msra.mxu0 0.0
    %84 = vmatprep.subr.mxu0 0.0
    %85 = vmatpush1.msra.mxu0 0.0
    %86 = vmatprep.subr.mxu0 0.0
    %87 = vmatpush1.msra.mxu0 0.0
    %88 = vmatprep.subr.mxu0 0.0
    %89 = vmatpush1.msra.mxu0 0.0
    %90 = vmatprep.subr.mxu0 0.0
    %91 = vmatpush1.msra.mxu0 0.0
    %92 = vmatprep.subr.mxu0 0.0
    %93 = vmatpush1.msra.mxu0 0.0
    %94 = vmatprep.subr.mxu0 0.0
    %95 = vmatpush1.msra.mxu0 0.0
    %96 = vmatprep.subr.mxu0 0.0
    %97 = vmatpush1.msra.mxu0 0.0
    %98 = vmatprep.subr.mxu0 0.0
    %99 = vmatpush1.msra.mxu0 0.0
    %100 = vmatprep.subr.mxu0 0.0
    %101 = vmatpush1.msra.mxu0 %v64
    %102 = vmatprep.subr.mxu0 0.0
    %103 = vmatpush1.msra.mxu0 %v63
    %104 = vmatprep.subr.mxu0 0.0
    %105 = vmatpush1.msra.mxu0 %v62
    %106 = vmatprep.subr.mxu0 0.0
    %107 = vmatpush1.msra.mxu0 %v61
    %108 = vmatprep.subr.mxu0 0.0
    %109 = vmatpush2.msra.mxu0 0.0
    %110 = vmatprep.subr.mxu0 0.0
    %111 = vmatpush2.msra.mxu0 0.0
    %112 = vmatprep.subr.mxu0 0.0
    %113 = vmatpush2.msra.mxu0 0.0
    %114 = vmatprep.subr.mxu0 0.0
    %115 = vmatpush2.msra.mxu0 0.0
    %116 = vmatprep.subr.mxu0 0.0
    %117 = vmatpush2.msra.mxu0 0.0
    %118 = vmatprep.subr.mxu0 0.0
    %119 = vmatpush2.msra.mxu0 0.0
    %120 = vmatprep.subr.mxu0 0.0
    %121 = vmatpush2.msra.mxu0 0.0
    %122 = vmatprep.subr.mxu0 0.0
    %123 = vmatpush2.msra.mxu0 0.0
    %124 = vmatprep.subr.mxu0 0.0
    %125 = vmatpush2.msra.mxu0 0.0
    %126 = vmatprep.subr.mxu0 0.0
    %127 = vmatpush2.msra.mxu0 0.0
    %128 = vmatprep.subr.mxu0 0.0
    %129 = vmatpush2.msra.mxu0 0.0
    %130 = vmatprep.subr.mxu0 0.0
    %131 = vmatpush2.msra.mxu0 0.0
    %132 = vmatprep.subr.mxu0 0.0
    %133 = vmatpush2.msra.mxu0 0.0
    %134 = vmatprep.subr.mxu0 0.0
    %135 = vmatpush2.msra.mxu0 0.0
    %136 = vmatprep.subr.mxu0 0.0
    %137 = vmatpush2.msra.mxu0 0.0
    %138 = vmatprep.subr.mxu0 0.0
    %139 = vmatpush2.msra.mxu0 0.0
    %140 = vmatprep.mubr.f32.mxu0 0.0
    %141 = vmatmul.mubr.f32.gmra.mxu0 %v74
    %v142 = vpop.f32.mrf.mxu0
    %v143 = vadd.f32 %v70, %v142
    %v144 = vpop.f32.mrf.mxu0
    %145 = vdwg.mxu0
    %v146 = vmul.f32 %v143, 0.5
    %v147 = vmul.f32 %v143, 0.70710677
    %v148 = verf.f32.pop %v147
    %v149 = vadd.f32 %v148, 1.0
    %v150 = vmul.f32 %v146, %v149
    %v151 = vld [vmem:[#allocation7] sm:$0xff]
    %v152 = vld [vmem:[#allocation7 + $0x8] sm:$0xff]
    %v153 = vld [vmem:[#allocation7 + $0x10] sm:$0xff]
    %v154 = vld [vmem:[#allocation7 + $0x18] sm:$0xff]
    %v155 = vld [vmem:[#allocation7 + $0x20] sm:$0xff]
    %v156 = vld [vmem:[#allocation7 + $0x28] sm:$0xff]
    %v157 = vld [vmem:[#allocation7 + $0x30] sm:$0xff]
    %v158 = vld [vmem:[#allocation7 + $0x38] sm:$0xff]
    %v159 = vld [vmem:[%s4] sm:$0x1]
    %v161 = vlaneseq
    %v162 = vshrl.u32 %v161, 7
    %v163 = vsub.s32 0, %v162
    %v164 = vrot.slane %v159, %v163
    %vm166 = vcmask 523264
    %v168 = vsel %vm166, %v150, 0
    %170 = vmatprep.subr.mxu0 0.0
    %171 = vmatpush1.msra.mxu0 0.0
    %172 = vmatprep.subr.mxu0 0.0
    %173 = vmatpush1.msra.mxu0 0.0
    %174 = vmatprep.subr.mxu0 0.0
    %175 = vmatpush1.msra.mxu0 0.0
    %176 = vmatprep.subr.mxu0 0.0
    %177 = vmatpush1.msra.mxu0 0.0
    %178 = vmatprep.subr.mxu0 0.0
    %179 = vmatpush1.msra.mxu0 0.0
    %180 = vmatprep.subr.mxu0 0.0
    %181 = vmatpush1.msra.mxu0 0.0
    %182 = vmatprep.subr.mxu0 0.0
    %183 = vmatpush1.msra.mxu0 0.0
    %184 = vmatprep.subr.mxu0 0.0
    %185 = vmatpush1.msra.mxu0 0.0
    %186 = vmatprep.subr.mxu0 0.0
    %187 = vmatpush1.msra.mxu0 %v158
    %188 = vmatprep.subr.mxu0 0.0
    %189 = vmatpush1.msra.mxu0 %v157
    %190 = vmatprep.subr.mxu0 0.0
    %191 = vmatpush1.msra.mxu0 %v156
    %192 = vmatprep.subr.mxu0 0.0
    %193 = vmatpush1.msra.mxu0 %v155
    %194 = vmatprep.subr.mxu0 0.0
    %195 = vmatpush1.msra.mxu0 %v154
    %196 = vmatprep.subr.mxu0 0.0
    %197 = vmatpush1.msra.mxu0 %v153
    %198 = vmatprep.subr.mxu0 0.0
    %199 = vmatpush1.msra.mxu0 %v152
    %200 = vmatprep.subr.mxu0 0.0
    %201 = vmatpush1.msra.mxu0 %v151
    %202 = vmatprep.subr.mxu0 0.0
    %203 = vmatpush2.msra.mxu0 0.0
    %204 = vmatprep.subr.mxu0 0.0
    %205 = vmatpush2.msra.mxu0 0.0
    %206 = vmatprep.subr.mxu0 0.0
    %207 = vmatpush2.msra.mxu0 0.0
    %208 = vmatprep.subr.mxu0 0.0
    %209 = vmatpush2.msra.mxu0 0.0
    %210 = vmatprep.subr.mxu0 0.0
    %211 = vmatpush2.msra.mxu0 0.0
    %212 = vmatprep.subr.mxu0 0.0
    %213 = vmatpush2.msra.mxu0 0.0
    %214 = vmatprep.subr.mxu0 0.0
    %215 = vmatpush2.msra.mxu0 0.0
    %216 = vmatprep.subr.mxu0 0.0
    %217 = vmatpush2.msra.mxu0 0.0
    %218 = vmatprep.subr.mxu0 0.0
    %219 = vmatpush2.msra.mxu0 0.0
    %220 = vmatprep.subr.mxu0 0.0
    %221 = vmatpush2.msra.mxu0 0.0
    %222 = vmatprep.subr.mxu0 0.0
    %223 = vmatpush2.msra.mxu0 0.0
    %224 = vmatprep.subr.mxu0 0.0
    %225 = vmatpush2.msra.mxu0 0.0
    %226 = vmatprep.subr.mxu0 0.0
    %227 = vmatpush2.msra.mxu0 0.0
    %228 = vmatprep.subr.mxu0 0.0
    %229 = vmatpush2.msra.mxu0 0.0
    %230 = vmatprep.subr.mxu0 0.0
    %231 = vmatpush2.msra.mxu0 0.0
    %232 = vmatprep.subr.mxu0 0.0
    %233 = vmatpush2.msra.mxu0 0.0
    %234 = vmatprep.mubr.f32.mxu0 0.0
    %235 = vmatmul.mubr.f32.gmra.mxu0 %v168
    %v236 = vpop.f32.mrf.mxu0
    %v237 = vadd.f32 %v164, %v236
    %v238 = vpop.f32.mrf.mxu0
    %239 = vdwg.mxu0
    %240 = vst.msk [vmem:[#allocation8] sm:$0xff] %vm166, %v237
    // Predicated region
    $region34: #{tpu_custom_call.1} parent=1 // pred_check
      _
    $region35: #{tpu_custom_call.1} parent=1 // pred_check_branch
      %242 = sbr.rel (0) target = $region37
    $region36: #{tpu_custom_call.1} parent=1 // pred_region
      %s244 = ssub.s32 128, 128
      %245 = vsyncadd [#allocation4], %s244
      %s247 = sshll.u32 [#allocation8], 4
      %s248 = int_to_ptr.vmem [resolvable:$true] %s247
      %250 = dma.vmem_to_hbm [thread:$0]  %s248, 128, %s5, [#allocation4]
    $region37: #{tpu_custom_call.1} parent=1 // pred_fallthru
      _
    // Predicated region
    $region38: #{tpu_custom_call.1} parent=1 // pred_check
      _
    $region39: #{tpu_custom_call.1} parent=1 // pred_check_branch
      %252 = sbr.rel (0) target = $region41
    $region40: #{tpu_custom_call.1} parent=1 // pred_region
      %253 = dma.done [#allocation4], 128
    $region41: #{tpu_custom_call.1} parent=1 // pred_fallthru
      _
    %254 = vsyncpa [#allocation3], 1
    %255 = vsyncpa [#allocation6], 1
    %256 = vsyncpa [#allocation4], 1

</llo_original>
